<compile_context>
chip_gen: v7x
topology: tpu7x:2x2x1
jax: 0.10.0
libtpu: 0.0.40
codegen_flags: <defaults>
</compile_context>

<pallas_src>
import functools

import jax
import jax.numpy as jnp
from jax.experimental import pallas as pl
from jax.experimental.pallas import tpu as pltpu

BN_EPS = 1e-5


# ---------------------------------------------------------------------------
# Pallas kernel: fused AdaptiveAvgPool2d(1) + ConvBNReLU(1x1) + Conv1x1 + BN
#                + Sigmoid + channel-wise gating, whole batch in one shot.
# ---------------------------------------------------------------------------
def _se_block_kernel(x_ref, p_ref, o_ref, *, Cs):
    """x_ref : (B, C, HW)     activations, HW lane-dense (multiple of 128)
       p_ref : (C, 3*Cs + 1)  packed parameters (all BN-folded, eval mode):
               [:, 0:Cs]       squeeze 1x1 weight^T, scaled by 1/HW
               [:, Cs:2Cs]     excite 1x1 weight
               [0, 2Cs:3Cs]    squeeze bias
               [:, 3Cs]        excite bias
       o_ref : (B, C, HW)     x * sigmoid(excite(relu(squeeze(avgpool(x)))))
    """
    x = x_ref[...]                                      # (B, C, HW)  f32
    p = p_ref[...]                                      # (C, 3Cs+1)  f32

    # Zero-cost static unpacking of the single packed parameter operand.
    w1t = p[:, 0:Cs]                                    # (C, Cs)  incl. 1/HW
    w2 = p[:, Cs:2 * Cs]                                # (C, Cs)
    b1 = p[0:1, 2 * Cs:3 * Cs]                          # (1, Cs)
    b2 = p[:, 3 * Cs:3 * Cs + 1]                        # (C, 1)

    # AdaptiveAvgPool2d(1): raw lane-axis sum over HW; 1/HW lives in w1t.
    pooled = jnp.sum(x, axis=2, keepdims=True)          # (B, C, 1)

    # Squeeze 1x1 conv + folded BN + ReLU:
    #   h[b, j] = relu(sum_i w1t[i, j] * pooled[b, i] + b1[j])
    # contraction over C via broadcast-mul + sublane reduce -> (B, 1, Cs)
    h = jnp.sum(w1t[None, :, :] * pooled, axis=1, keepdims=True) + b1[None]
    h = jnp.maximum(h, 0.0)

    # Excite 1x1 conv + folded BN:
    #   s[b, k] = sum_j w2[k, j] * h[b, j] + b2[k]
    # contraction over Cs via broadcast-mul + lane reduce -> (B, C, 1)
    s = jnp.sum(w2[None, :, :] * h, axis=2, keepdims=True) + b2[None]

    # Sigmoid gate (exp on EUP), then channel-wise gating of x (lane broadcast).
    gate = 1.0 / (1.0 + jnp.exp(-s))                    # (B, C, 1)
    o_ref[...] = (x * gate).astype(o_ref.dtype)         # one store per element


# ---------------------------------------------------------------------------
# Wrapper: NCHW <-> (B, C, HW) plumbing + single-invocation pallas_call
# ---------------------------------------------------------------------------
def se_block_bn(x, packed):
    """SEBlockWithBN forward.  x: (B, C, H, W) float32 (PyTorch NCHW)."""
    B, C, H, W = x.shape
    HW = H * W
    Cs = (packed.shape[1] - 1) // 3
    xf = x.reshape(B, C, HW)                            # pure reshape, no transpose

    kern = functools.partial(_se_block_kernel, Cs=Cs)
    out = pl.pallas_call(
        kern,
        # No grid: the whole problem (~32 KiB of HBM traffic) is one block.
        in_specs=[
            pl.BlockSpec(memory_space=pltpu.MemorySpace.VMEM),
            pl.BlockSpec(memory_space=pltpu.MemorySpace.VMEM),
        ],
        out_specs=pl.BlockSpec(memory_space=pltpu.MemorySpace.VMEM),
        out_shape=jax.ShapeDtypeStruct((B, C, HW), x.dtype),
    )(xf, packed)
    return out.reshape(B, C, H, W)


# ---------------------------------------------------------------------------
# Deterministic parameter init (Conv + eval-mode BatchNorm folded + packing)
# ---------------------------------------------------------------------------
def _fold_bn(w, b, gamma, beta, mean, var):
    """Fold eval-mode BatchNorm into a 1x1 conv's weight (out, in) and bias."""
    scale = gamma * jax.lax.rsqrt(var + BN_EPS)
    return w * scale[:, None], (b - mean) * scale + beta


def init_params(key, C, Cs, hw):
    ks = jax.random.split(key, 12)
    # scale[1]: ConvBNReLU -> Conv2d(C, Cs, 1, bias=True) + BatchNorm2d(Cs) (+ReLU)
    w1 = jax.random.normal(ks[0], (Cs, C), jnp.float32) / jnp.sqrt(C)
    b1 = 0.1 * jax.random.normal(ks[1], (Cs,), jnp.float32)
    g1 = 1.0 + 0.1 * jax.random.normal(ks[2], (Cs,), jnp.float32)
    be1 = 0.1 * jax.random.normal(ks[3], (Cs,), jnp.float32)
    m1 = 0.1 * jax.random.normal(ks[4], (Cs,), jnp.float32)
    v1 = jax.random.uniform(ks[5], (Cs,), jnp.float32, minval=0.5, maxval=1.5)
    w1f, b1f = _fold_bn(w1, b1, g1, be1, m1, v1)

    # scale[2..3]: Conv2d(Cs, C, 1, bias=True) + BatchNorm2d(C) (sigmoid in kernel)
    w2 = jax.random.normal(ks[6], (C, Cs), jnp.float32) / jnp.sqrt(Cs)
    b2 = 0.1 * jax.random.normal(ks[7], (C,), jnp.float32)
    g2 = 1.0 + 0.1 * jax.random.normal(ks[8], (C,), jnp.float32)
    be2 = 0.1 * jax.random.normal(ks[9], (C,), jnp.float32)
    m2 = 0.1 * jax.random.normal(ks[10], (C,), jnp.float32)
    v2 = jax.random.uniform(ks[11], (C,), jnp.float32, minval=0.5, maxval=1.5)
    w2f, b2f = _fold_bn(w2, b2, g2, be2, m2, v2)

    # Pack everything into ONE (C, 3*Cs+1) operand -> one DMA at kernel start.
    packed = jnp.zeros((C, 3 * Cs + 1), jnp.float32)
    packed = packed.at[:, 0:Cs].set(w1f.T / hw)       # squeeze weight^T, 1/HW folded
    packed = packed.at[:, Cs:2 * Cs].set(w2f)         # excite weight
    packed = packed.at[0, 2 * Cs:3 * Cs].set(b1f)     # squeeze bias (row 0)
    packed = packed.at[:, 3 * Cs].set(b2f)            # excite bias

    folded = {"w1t": w1f.T, "b1": b1f, "w2": w2f, "b2": b2f}
    return packed, folded


def se_reference(x, p):
    """Pure-JAX reference of SEBlockWithBN (eval-mode BN folded), NCHW."""
    pooled = jnp.mean(x, axis=(2, 3))                             # (B, C)
    h = jnp.maximum(pooled @ p["w1t"] + p["b1"][None, :], 0.0)    # (B, Cs)
    s = h @ p["w2"].T + p["b2"][None, :]                          # (B, C)
    gate = 1.0 / (1.0 + jnp.exp(-s))
    return x * gate[:, :, None, None]


if __name__ == "__main__":
    # NCHW input, same convention as the PyTorch module.
    B, C, H, W = 2, 8, 16, 16
    Cs = C // 2                        # default squeeze_channels = channels // 2
    root = jax.random.PRNGKey(0)
    kx, kp = jax.random.split(root)
    x = jax.random.normal(kx, (B, C, H, W), jnp.float32)
    packed, folded = init_params(kp, C, Cs, H * W)

    out = jax.jit(se_block_bn)(x, packed)
    out = jax.block_until_ready(out)
    ref = se_reference(x, folded)

    assert out.shape == (B, C, H, W)
    assert bool(jnp.all(jnp.isfinite(out)))
    assert bool(jnp.allclose(out, ref, atol=1e-5, rtol=1e-5))
    print("KERNEL_OK")
</pallas_src>

<mosaic_0001>
module attributes {stable_mosaic.version = 11 : i64} {
  func.func @_se_block_kernel(%arg0: memref<2x8x256xf32, #tpu.memory_space<vmem>>, %arg1: memref<8x13xf32, #tpu.memory_space<vmem>>, %arg2: memref<2x8x256xf32, #tpu.memory_space<vmem>>) attributes {dimension_semantics = [], scalar_prefetch = 0 : i64, scratch_operands = 0 : i64, tpu.core_type = #tpu.core_type<tc>} {
    %c0 = arith.constant 0 : index
    %c0_0 = arith.constant 0 : index
    %c0_1 = arith.constant 0 : index
    %0 = vector.load %arg0[%c0, %c0_0, %c0_1] : memref<2x8x256xf32, #tpu.memory_space<vmem>>, vector<2x8x256xf32>
    %c0_2 = arith.constant 0 : index
    %c0_3 = arith.constant 0 : index
    %1 = vector.load %arg1[%c0_2, %c0_3] : memref<8x13xf32, #tpu.memory_space<vmem>>, vector<8x13xf32>
    %2 = vector.extract_strided_slice %1 {offsets = [0, 0], sizes = [8, 4], strides = [1, 1]} : vector<8x13xf32> to vector<8x4xf32>
    %3 = vector.extract_strided_slice %1 {offsets = [0, 4], sizes = [8, 4], strides = [1, 1]} : vector<8x13xf32> to vector<8x4xf32>
    %4 = vector.extract_strided_slice %1 {offsets = [0, 8], sizes = [1, 4], strides = [1, 1]} : vector<8x13xf32> to vector<1x4xf32>
    %5 = vector.extract_strided_slice %1 {offsets = [0, 12], sizes = [8, 1], strides = [1, 1]} : vector<8x13xf32> to vector<8x1xf32>
    %cst = arith.constant dense<0.000000e+00> : vector<2x8xf32>
    %6 = vector.multi_reduction <add>, %0, %cst [2] : vector<2x8x256xf32> to vector<2x8xf32>
    %7 = vector.shape_cast %6 : vector<2x8xf32> to vector<2x8x1xf32>
    %8 = vector.shape_cast %2 : vector<8x4xf32> to vector<1x8x4xf32>
    %9 = vector.broadcast %8 : vector<1x8x4xf32> to vector<2x8x4xf32>
    %10 = vector.broadcast %7 : vector<2x8x1xf32> to vector<2x8x4xf32>
    %11 = arith.mulf %9, %10 : vector<2x8x4xf32>
    %cst_4 = arith.constant dense<0.000000e+00> : vector<2x4xf32>
    %12 = vector.multi_reduction <add>, %11, %cst_4 [1] : vector<2x8x4xf32> to vector<2x4xf32>
    %13 = vector.shape_cast %12 : vector<2x4xf32> to vector<2x1x4xf32>
    %14 = vector.shape_cast %4 : vector<1x4xf32> to vector<1x1x4xf32>
    %15 = vector.broadcast %14 : vector<1x1x4xf32> to vector<2x1x4xf32>
    %16 = arith.addf %13, %15 : vector<2x1x4xf32>
    %cst_5 = arith.constant 0.000000e+00 : f32
    %17 = vector.broadcast %cst_5 : f32 to vector<2x1x4xf32>
    %18 = arith.maximumf %16, %17 : vector<2x1x4xf32>
    %19 = vector.shape_cast %3 : vector<8x4xf32> to vector<1x8x4xf32>
    %20 = vector.broadcast %19 : vector<1x8x4xf32> to vector<2x8x4xf32>
    %21 = vector.broadcast %18 : vector<2x1x4xf32> to vector<2x8x4xf32>
    %22 = arith.mulf %20, %21 : vector<2x8x4xf32>
    %cst_6 = arith.constant dense<0.000000e+00> : vector<2x8xf32>
    %23 = vector.multi_reduction <add>, %22, %cst_6 [2] : vector<2x8x4xf32> to vector<2x8xf32>
    %24 = vector.shape_cast %23 : vector<2x8xf32> to vector<2x8x1xf32>
    %25 = vector.shape_cast %5 : vector<8x1xf32> to vector<1x8x1xf32>
    %26 = vector.broadcast %25 : vector<1x8x1xf32> to vector<2x8x1xf32>
    %27 = arith.addf %24, %26 : vector<2x8x1xf32>
    %cst_7 = arith.constant 0.000000e+00 : f32
    %28 = vector.broadcast %cst_7 : f32 to vector<2x8x1xf32>
    %29 = arith.subf %28, %27 : vector<2x8x1xf32>
    %30 = math.exp %29 : vector<2x8x1xf32>
    %cst_8 = arith.constant 1.000000e+00 : f32
    %31 = vector.broadcast %cst_8 : f32 to vector<2x8x1xf32>
    %32 = arith.addf %31, %30 : vector<2x8x1xf32>
    %cst_9 = arith.constant 1.000000e+00 : f32
    %33 = vector.broadcast %cst_9 : f32 to vector<2x8x1xf32>
    %34 = arith.divf %33, %32 : vector<2x8x1xf32>
    %35 = vector.broadcast %34 : vector<2x8x1xf32> to vector<2x8x256xf32>
    %36 = arith.mulf %0, %35 : vector<2x8x256xf32>
    %c0_10 = arith.constant 0 : index
    %c0_11 = arith.constant 0 : index
    %c0_12 = arith.constant 0 : index
    %37 = vector.load %arg2[%c0_10, %c0_11, %c0_12] : memref<2x8x256xf32, #tpu.memory_space<vmem>>, vector<2x8x256xf32>
    tpu.vector_store %arg2[%c0_10, %c0_11, %c0_12], %36 {strides = array<i32>} : memref<2x8x256xf32, #tpu.memory_space<vmem>>, vector<2x8x256xf32>,
    return
  }
}

</mosaic_0001>

<llo_original>
// kernel: se_block_bn.1
$region0: #{se_block_bn.1}
  #allocation0 [shape = 'u32[]', space=smem, size = 0x4, offset = 0x4, fixed_abs, tag = 'smem constant byte address 0x4 - core index']
  #allocation1 [shape = 'u32[144,128]{1,0:T(1,128)}', space=vmem, size = 0x12000, scoped, tag = 'internal scratch']
  %s0 = inlined_call_operand.vmem [shape: f32[2,8,256], index: 0, kind: input, shape index: {}]
  %s1 = inlined_call_operand.vmem [shape: f32[8,13], index: 1, kind: input, shape index: {}]
  %s2 = inlined_call_operand.vmem [shape: f32[2,8,256], index: 2, kind: output, shape index: {}]
  %s3 = sld [smem:[#allocation0]]
  $region18: #{se_block_bn.1} parent=0
    _
  %s5 = ssub.s32 1, %s3
  %s6 = scalar_select 0, %s5, %s3
  // Predicated region
  $region2: #{se_block_bn.1} parent=0 // pred_check
    _
  $region3: #{se_block_bn.1} parent=0 // pred_check_branch
    %8 = sbr.rel (0) target = $region5
  $region4: #{se_block_bn.1} parent=0 // pred_region
    _
  $region5: #{se_block_bn.1} parent=0 // pred_fallthru
    _
  // Predicated region
  $region6: #{se_block_bn.1} parent=0 // pred_check
    _
  $region7: #{se_block_bn.1} parent=0 // pred_check_branch
    %10 = sbr.rel (0) target = $region9
  $region8: #{se_block_bn.1} parent=0 // pred_region
    _
  $region9: #{se_block_bn.1} parent=0 // pred_fallthru
    _
  %v11 = vld [vmem:[%s0] sm:$0xff]
  %v12 = vld [vmem:[%s0 + $0x8] sm:$0xff]
  %v13 = vld [vmem:[%s0 + $0x10] sm:$0xff]
  %v14 = vld [vmem:[%s0 + $0x18] sm:$0xff]
  %v15 = vld [vmem:[%s1] sm:$0xff]
  %v16 = vadd.f32 %v11, %v12
  %17 = vadd.xlane.f32.xlu0 %v16
  %v18 = vpop.xlane.xlu0 %17
  %v19 = vadd.f32 %v13, %v14
  %20 = vadd.xlane.f32.xlu0 %v19
  %v21 = vpop.xlane.xlu0 %20
  %v22 = vmul.f32 %v15, %v18
  %v23 = vmul.f32 %v15, %v21
  %vm24 = vcmask 31744
  %v25 = vsel %vm24, %v22, 0.0
  %v26 = vrot.slane %v25, 4
  %v27 = vadd.f32 %v25, %v26
  %v28 = vrot.slane %v27, 2
  %v29 = vadd.f32 %v27, %v28
  %v30 = vrot.slane %v29, 1
  %v31 = vadd.f32 %v29, %v30
  %v32 = vsel %vm24, %v23, 0.0
  %v33 = vrot.slane %v32, 4
  %v34 = vadd.f32 %v32, %v33
  %v35 = vrot.slane %v34, 2
  %v36 = vadd.f32 %v34, %v35
  %v37 = vrot.slane %v36, 1
  %v38 = vadd.f32 %v36, %v37
  %40 = vrot.lane.b32.xlu0 %v15, 120
  %v41 = vpop.permute.xlu0 %40
  %v43 = vadd.f32 %v31, %v41
  %v44 = vadd.f32 %v38, %v41
  %v45 = vmax.f32 %v43, 0.0
  %v46 = vmax.f32 %v44, 0.0
  %v47 = vlaneseq
  %v48 = vshrl.u32 %v47, 7
  %v49 = vsub.s32 0, %v48
  %v50 = vrot.slane %v45, %v49
  %v51 = vlaneseq
  %v52 = vshrl.u32 %v51, 7
  %v53 = vsub.s32 0, %v52
  %v54 = vrot.slane %v46, %v53
  %57 = vrot.lane.b32.xlu0 %v50, 4
  %v58 = vpop.permute.xlu0 %57
  %59 = vrot.lane.b32.xlu0 %v54, 4
  %v60 = vpop.permute.xlu0 %59
  %v63 = vmul.f32 %v15, %v58
  %v64 = vmul.f32 %v15, %v60
  %67 = vrot.lane.b32.xlu0 %v63, 124
  %v68 = vpop.permute.xlu0 %67
  %69 = vrot.lane.b32.xlu0 %v64, 124
  %v70 = vpop.permute.xlu0 %69
  %v73 = vsel %vm24, %v68, 0.0
  %74 = vadd.xlane.f32.xlu0 %v73
  %v75 = vpop.xlane.xlu0 %74
  %v76 = vsel %vm24, %v70, 0.0
  %77 = vadd.xlane.f32.xlu0 %v76
  %v78 = vpop.xlane.xlu0 %77
  %v79 = vadd.f32 %v75, %v15
  %v80 = vadd.f32 %v78, %v15
  %v81 = vsub.f32 0.0, %v79
  %v82 = vsub.f32 0.0, %v80
  %v83 = vmul.f32 %v81, 1.442695
  %v84 = vpow.pop %v83
  %v85 = vmul.f32 %v82, 1.442695
  %v86 = vpow.pop %v85
  %v87 = vadd.f32 %v84, 1.0
  %v88 = vadd.f32 %v86, 1.0
  %v89 = vrcp.pop %v87
  %v90 = vmul.f32 1.0, %v89
  %v91 = vrcp.pop %v88
  %v92 = vmul.f32 1.0, %v91
  %94 = vset.pattern.permute.xlu0 12
  %95 = vperm.xlu0 %94, %v90
  %v96 = vpop.permute.xlu0 %95
  %99 = vset.pattern.permute.xlu0 12
  %100 = vperm.xlu0 %99, %v92
  %v101 = vpop.permute.xlu0 %100
  %v103 = vmul.f32 %v11, %v96
  %v104 = vmul.f32 %v12, %v96
  %v105 = vmul.f32 %v13, %v101
  %v106 = vmul.f32 %v14, %v101
  %107 = vst [vmem:[%s2] sm:$0xff] %v103
  %108 = vst [vmem:[%s2 + $0x8] sm:$0xff] %v104
  %109 = vst [vmem:[%s2 + $0x10] sm:$0xff] %v105
  %110 = vst [vmem:[%s2 + $0x18] sm:$0xff] %v106
  // Predicated region
  $region10: #{se_block_bn.1} parent=0 // pred_check
    _
  $region11: #{se_block_bn.1} parent=0 // pred_check_branch
    %112 = sbr.rel (0) target = $region13
  $region12: #{se_block_bn.1} parent=0 // pred_region
    _
  $region13: #{se_block_bn.1} parent=0 // pred_fallthru
    _
  // Predicated region
  $region14: #{se_block_bn.1} parent=0 // pred_check
    _
  $region15: #{se_block_bn.1} parent=0 // pred_check_branch
    %114 = sbr.rel (0) target = $region17
  $region16: #{se_block_bn.1} parent=0 // pred_region
    _
  $region17: #{se_block_bn.1} parent=0 // pred_fallthru
    _

</llo_original>
